<compile_context>
chip_gen: v7x
topology: tpu7x:2x2x1
jax: 0.10.0
libtpu: 0.0.40
codegen_flags: <defaults>
</compile_context>

<pallas_src>
import math

import jax
import jax.numpy as jnp
from jax.experimental import pallas as pl
from jax.experimental.pallas import tpu as pltpu

# ---- model / example dimensions (small, consistent with the module) ----
B, S = 2, 8          # batch, sequence length (token ids)
D = 32               # d_model
V = 64               # vocab size
BS = B * S
SCALE = math.sqrt(D)


def embeddings_kernel(ids_ref, table_ref, out_ref):
    """Embedding lookup + sqrt(d_model) scale for all B*S tokens at once.

    ids_ref:   [B*S, 1] int32 token ids (batch folded into the matmul M dim)
    table_ref: [V, D]   f32 embedding table, fully resident in VMEM
    out_ref:   [B*S, D] f32 scaled embeddings
    """
    ids = ids_ref[...]                                              # [BS, 1]
    vocab_iota = jax.lax.broadcasted_iota(jnp.int32, (BS, V), 1)    # [BS, V]
    onehot = (ids == vocab_iota).astype(jnp.float32)                # exact 0/1
    # One-hot x table on the MXU == row gather: each output row sums exactly
    # one nonzero product, so the lookup is exact.
    emb = jnp.dot(onehot, table_ref[...], preferred_element_type=jnp.float32)
    out_ref[...] = emb * SCALE


def embeddings(token_ids, table):
    """token_ids: [B, S] int, table: [V, D] f32 -> [B, S, D] f32."""
    ids2d = token_ids.reshape(BS, 1).astype(jnp.int32)
    out = pl.pallas_call(
        embeddings_kernel,
        out_shape=jax.ShapeDtypeStruct((BS, D), jnp.float32),
        in_specs=[
            pl.BlockSpec(memory_space=pltpu.MemorySpace.VMEM),   # token ids
            pl.BlockSpec(memory_space=pltpu.MemorySpace.VMEM),   # embedding table
        ],
        out_specs=pl.BlockSpec(memory_space=pltpu.MemorySpace.VMEM),
    )(ids2d, table)
    return out.reshape(B, S, D)


# ----------------------- pure-JAX reference (for sanity check) -----------------------
def embeddings_ref(token_ids, table):
    return table[token_ids] * SCALE


if __name__ == "__main__":
    key = jax.random.PRNGKey(0)
    k_ids, k_tab = jax.random.split(key)

    token_ids = jax.random.randint(k_ids, (B, S), 0, V, dtype=jnp.int32)
    # Keep table values bf16-representable so the check against the pure-JAX
    # reference is exact regardless of the MXU's f32 pass count.
    table = (jax.random.normal(k_tab, (V, D), dtype=jnp.float32)
             .astype(jnp.bfloat16).astype(jnp.float32))

    out = embeddings(token_ids, table)
    out = jax.block_until_ready(out)

    ref = embeddings_ref(token_ids, table)
    assert out.shape == (B, S, D)
    assert jnp.allclose(out, ref, rtol=1e-5, atol=1e-5), "mismatch vs JAX reference"

    print("KERNEL_OK")
</pallas_src>

<mosaic_0001>
module attributes {stable_mosaic.version = 11 : i64} {
  func.func @embeddings_kernel(%arg0: memref<16x1xi32, #tpu.memory_space<vmem>>, %arg1: memref<64x32xf32, #tpu.memory_space<vmem>>, %arg2: memref<16x32xf32, #tpu.memory_space<vmem>>) attributes {dimension_semantics = [], scalar_prefetch = 0 : i64, scratch_operands = 0 : i64, tpu.core_type = #tpu.core_type<tc>} {
    %c0 = arith.constant 0 : index
    %c0_0 = arith.constant 0 : index
    %0 = vector.load %arg0[%c0, %c0_0] : memref<16x1xi32, #tpu.memory_space<vmem>>, vector<16x1xi32>
    %1 = tpu.iota {dimensions = array<i32: 1>} : vector<16x64xi32>
    %2 = vector.broadcast %0 : vector<16x1xi32> to vector<16x64xi32>
    %3 = arith.cmpi eq, %2, %1 : vector<16x64xi32>
    %4 = arith.extui %3 : vector<16x64xi1> to vector<16x64xi32>
    %5 = arith.sitofp %4 : vector<16x64xi32> to vector<16x64xf32>
    %c0_1 = arith.constant 0 : index
    %c0_2 = arith.constant 0 : index
    %6 = vector.load %arg1[%c0_1, %c0_2] : memref<64x32xf32, #tpu.memory_space<vmem>>, vector<64x32xf32>
    %cst = arith.constant dense<0.000000e+00> : vector<16x32xf32>
    %7 = tpu.matmul %5, %6, %cst {dimension_numbers = #tpu.dot_dimension_numbers<[1], [0], [0], [1], [0, 0, 1, 1], [], []>} : vector<16x64xf32>, vector<64x32xf32>, vector<16x32xf32> -> vector<16x32xf32>
    %cst_3 = arith.constant 5.65685415 : f32
    %8 = vector.broadcast %cst_3 : f32 to vector<16x32xf32>
    %9 = arith.mulf %7, %8 : vector<16x32xf32>
    %c0_4 = arith.constant 0 : index
    %c0_5 = arith.constant 0 : index
    %10 = vector.load %arg2[%c0_4, %c0_5] : memref<16x32xf32, #tpu.memory_space<vmem>>, vector<16x32xf32>
    tpu.vector_store %arg2[%c0_4, %c0_5], %9 {strides = array<i32>} : memref<16x32xf32, #tpu.memory_space<vmem>>, vector<16x32xf32>,
    return
  }
}

</mosaic_0001>

<llo_original>
// kernel: tpu_custom_call.1
$region0: #{tpu_custom_call.1}
  #allocation0 [shape = 'u32[]', space=smem, size = 0x4, offset = 0x4, fixed_abs, tag = 'smem constant byte address 0x4 - core index']
  #allocation1 [shape = 'u32[144,128]{1,0:T(1,128)}', space=vmem, size = 0x12000, scoped, tag = 'internal scratch']
  %s0 = inlined_call_operand.vmem [shape: s32[16,1], index: 0, kind: input, shape index: {}]
  %s1 = inlined_call_operand.vmem [shape: f32[64,32], index: 1, kind: input, shape index: {}]
  %s2 = inlined_call_operand.hbm [shape: f32[16,32], index: 2, kind: output, shape index: {}]
  %s3 = sld [smem:[#allocation0]]
  $region18: #{tpu_custom_call.1} parent=0
    _
  %s5 = ssub.s32 1, %s3
  %s6 = scalar_select 0, %s5, %s3
  $region1: #{tpu_custom_call.1} parent=0
    #allocation2 [shape = 'u8[8192]{0}', space=vmem, size = 0x2000, scoped, tag = 'output window, operand 0, single buffered']
    #allocation3 [shape = 's32[1]{0}', space=sflag, size = 0x4, scoped, tag = 'scoped memory for tpu_custom_call.1']
    %7 = vsyncpa [#allocation3], 0
    // Predicated region
    $region2: #{tpu_custom_call.1} parent=1 // pred_check
      _
    $region3: #{tpu_custom_call.1} parent=1 // pred_check_branch
      %9 = sbr.rel (0) target = $region5
    $region4: #{tpu_custom_call.1} parent=1 // pred_region
      _
    $region5: #{tpu_custom_call.1} parent=1 // pred_fallthru
      _
    // Predicated region
    $region6: #{tpu_custom_call.1} parent=1 // pred_check
      _
    $region7: #{tpu_custom_call.1} parent=1 // pred_check_branch
      %11 = sbr.rel (0) target = $region9
    $region8: #{tpu_custom_call.1} parent=1 // pred_region
      _
    $region9: #{tpu_custom_call.1} parent=1 // pred_fallthru
      _
    %v12 = vld [vmem:[%s0] sm:$0xff]
    %v13 = vld [vmem:[%s0 + $0x8] sm:$0xff]
    %v14 = vlaneseq
    %v15 = vand.u32 %v14, 127
    %16 = vset.pattern.permute.xlu0 0
    %17 = vperm.xlu0 %16, %v12
    %v18 = vpop.permute.xlu0 %17
    %19 = vset.pattern.permute.xlu0 0
    %20 = vperm.xlu0 %19, %v13
    %v21 = vpop.permute.xlu0 %20
    %vm22 = vcmp.eq.s32.totalorder %v18, %v15
    %vm23 = vcmp.eq.s32.totalorder %v21, %v15
    %v24 = vsel %vm22, 1, 0
    %v25 = vsel %vm23, 1, 0
    %v26 = vcvt.s32.f32 %v24
    %v27 = vcvt.s32.f32 %v25
    %v28 = vld [vmem:[%s1] sm:$0xff]
    %v29 = vld [vmem:[%s1 + $0x8] sm:$0xff]
    %v30 = vld [vmem:[%s1 + $0x10] sm:$0xff]
    %v31 = vld [vmem:[%s1 + $0x18] sm:$0xff]
    %v32 = vld [vmem:[%s1 + $0x20] sm:$0xff]
    %v33 = vld [vmem:[%s1 + $0x28] sm:$0xff]
    %v34 = vld [vmem:[%s1 + $0x30] sm:$0xff]
    %v35 = vld [vmem:[%s1 + $0x38] sm:$0xff]
    %vm36 = vcmask 523264
    %v38 = vsel %vm36, %v26, 0
    %v41 = vsel %vm36, %v27, 0
    %43 = vmatprep.subr.mxu0 0.0
    %44 = vmatpush1.msra.mxu0 %v28
    %45 = vmatprep.subr.mxu0 0.0
    %46 = vmatpush1.msra.mxu0 %v29
    %47 = vmatprep.subr.mxu0 0.0
    %48 = vmatpush1.msra.mxu0 %v30
    %49 = vmatprep.subr.mxu0 0.0
    %50 = vmatpush1.msra.mxu0 %v31
    %51 = vmatprep.subr.mxu0 0.0
    %52 = vmatpush1.msra.mxu0 %v32
    %53 = vmatprep.subr.mxu0 0.0
    %54 = vmatpush1.msra.mxu0 %v33
    %55 = vmatprep.subr.mxu0 0.0
    %56 = vmatpush1.msra.mxu0 %v34
    %57 = vmatprep.subr.mxu0 0.0
    %58 = vmatpush1.msra.mxu0 %v35
    %59 = vmatprep.subr.mxu0 0.0
    %60 = vmatpush1.msra.mxu0 0.0
    %61 = vmatprep.subr.mxu0 0.0
    %62 = vmatpush1.msra.mxu0 0.0
    %63 = vmatprep.subr.mxu0 0.0
    %64 = vmatpush1.msra.mxu0 0.0
    %65 = vmatprep.subr.mxu0 0.0
    %66 = vmatpush1.msra.mxu0 0.0
    %67 = vmatprep.subr.mxu0 0.0
    %68 = vmatpush1.msra.mxu0 0.0
    %69 = vmatprep.subr.mxu0 0.0
    %70 = vmatpush1.msra.mxu0 0.0
    %71 = vmatprep.subr.mxu0 0.0
    %72 = vmatpush1.msra.mxu0 0.0
    %73 = vmatprep.subr.mxu0 0.0
    %74 = vmatpush1.msra.mxu0 0.0
    %75 = vmatprep.subr.mxu0 0.0
    %76 = vmatpush1.msra.mxu0 0.0
    %77 = vmatprep.subr.mxu0 0.0
    %78 = vmatpush1.msra.mxu0 0.0
    %79 = vmatprep.subr.mxu0 0.0
    %80 = vmatpush1.msra.mxu0 0.0
    %81 = vmatprep.subr.mxu0 0.0
    %82 = vmatpush1.msra.mxu0 0.0
    %83 = vmatprep.subr.mxu0 0.0
    %84 = vmatpush1.msra.mxu0 0.0
    %85 = vmatprep.subr.mxu0 0.0
    %86 = vmatpush1.msra.mxu0 0.0
    %87 = vmatprep.subr.mxu0 0.0
    %88 = vmatpush1.msra.mxu0 0.0
    %89 = vmatprep.subr.mxu0 0.0
    %90 = vmatpush1.msra.mxu0 0.0
    %91 = vmatprep.subr.mxu0 0.0
    %92 = vmatpush1.msra.mxu0 0.0
    %93 = vmatprep.subr.mxu0 0.0
    %94 = vmatpush1.msra.mxu0 0.0
    %95 = vmatprep.subr.mxu0 0.0
    %96 = vmatpush1.msra.mxu0 0.0
    %97 = vmatprep.subr.mxu0 0.0
    %98 = vmatpush1.msra.mxu0 0.0
    %99 = vmatprep.subr.mxu0 0.0
    %100 = vmatpush1.msra.mxu0 0.0
    %101 = vmatprep.subr.mxu0 0.0
    %102 = vmatpush1.msra.mxu0 0.0
    %103 = vmatprep.subr.mxu0 0.0
    %104 = vmatpush1.msra.mxu0 0.0
    %105 = vmatprep.subr.mxu0 0.0
    %106 = vmatpush1.msra.mxu0 0.0
    %107 = vmatprep.mubr.f32.mxu0 0.0
    %108 = vmatmul.mubr.f32.gmra.mrb[0].mxu0 %v38
    %v109 = vpop.f32.mrb[0].mxu0
    %v110 = vadd.f32 0.0, %v109
    %v111 = vpop.f32.mrb[0].mxu0
    %112 = vmatprep.mubr.f32.mxu0 0.0
    %113 = vmatmul.mubr.f32.gmra.mrb[0].mxu0 %v41
    %v114 = vpop.f32.mrb[0].mxu0
    %v115 = vadd.f32 0.0, %v114
    %v116 = vpop.f32.mrb[0].mxu0
    %117 = vdwg.mxu0
    %v118 = vmul.f32 %v110, 5.656854
    %v119 = vmul.f32 %v115, 5.656854
    %vm120 = vcmask 261120
    %121 = vst.msk [vmem:[#allocation2] sm:$0xff] %vm120, %v118
    %122 = vst.msk [vmem:[#allocation2 + $0x8] sm:$0xff] %vm120, %v119
    // Predicated region
    $region10: #{tpu_custom_call.1} parent=1 // pred_check
      _
    $region11: #{tpu_custom_call.1} parent=1 // pred_check_branch
      %124 = sbr.rel (0) target = $region13
    $region12: #{tpu_custom_call.1} parent=1 // pred_region
      %s126 = ssub.s32 256, 256
      %127 = vsyncadd [#allocation3], %s126
      %s128 = sshll.u32 [#allocation2], 4
      %s129 = int_to_ptr.vmem [resolvable:$true] %s128
      %134 = dma.vmem_to_hbm [thread:$0]  %s129, 256, %s2, [#allocation3], 128, 128, 8
    $region13: #{tpu_custom_call.1} parent=1 // pred_fallthru
      _
    // Predicated region
    $region14: #{tpu_custom_call.1} parent=1 // pred_check
      _
    $region15: #{tpu_custom_call.1} parent=1 // pred_check_branch
      %136 = sbr.rel (0) target = $region17
    $region16: #{tpu_custom_call.1} parent=1 // pred_region
      %137 = dma.done [#allocation3], 256
    $region17: #{tpu_custom_call.1} parent=1 // pred_fallthru
      _
    %138 = vsyncpa [#allocation3], 1

</llo_original>
